<compile_context>
chip_gen: v5e
topology: v5e:2x2
jax: 0.10.0
libtpu: 0.0.40
codegen_flags: <defaults>
</compile_context>

<pallas_src>
import math

import jax
import jax.numpy as jnp
from jax.experimental import pallas as pl
from jax.experimental.pallas import tpu as pltpu


def _round_up(v, m):
    return ((v + m - 1) // m) * m


def _sem_graph_conv_kernel(x_ref, a_ref, d_ref, w0_ref, w1_ref, b_ref, o_ref):
    # x_ref:  (rows, C_in)   rows = bt * J_pad (one batch tile, batch folded into M)
    # a_ref:  (rows, rows)   block-diagonal kron(I_bt, adj_off)  (resident, constant)
    # d_ref:  (rows, 1)      tiled diag(adj)                      (resident, constant)
    # w0/w1:  (C_in, C_out)                                       (resident, constant)
    # b_ref:  (1, C_out)                                          (resident, constant)
    # o_ref:  (rows, C_out)
    x = x_ref[...]

    # One MXU push aggregates the whole batch tile (input-space aggregation).
    x_agg = jnp.dot(a_ref[...], x, preferred_element_type=jnp.float32).astype(x.dtype)

    # Diagonal term is a per-row scale (VPU), computed in f32 then cast back so
    # an optional bf16 MXU path keeps bf16 operands.
    x_diag = (d_ref[...] * x.astype(jnp.float32)).astype(x.dtype)

    # Two lane-aligned feature matmuls (no [W0|W1] concat, no lane-32 split),
    # bias folded into the same slab add.
    out = (jnp.dot(x_diag, w0_ref[...], preferred_element_type=jnp.float32)
           + jnp.dot(x_agg, w1_ref[...], preferred_element_type=jnp.float32)
           + b_ref[...])

    # Single full-slab store.
    o_ref[...] = out.astype(o_ref.dtype)


def sem_graph_conv(x, W, adj_logits, bias, *, batch_tile=None, mxu_dtype=None):
    """Forward pass of SemGraphConv.

    x:          (B, J, C_in)
    W:          (2, C_in, C_out)
    adj_logits: (J, J) masked adjacency logits (-9e15 where adj == 0, learned e elsewhere)
    bias:       (1, C_out) or (C_out,)
    batch_tile: samples per grid step (default: ~128 rows per tile).
    mxu_dtype:  optional narrower MXU operand dtype (e.g. jnp.bfloat16); valid on
                v5e/v6e/v7x (all bf16-native MXUs), accumulation stays f32.
                Default None keeps full f32 (matches the f32 reference at 1e-4).
    """
    B, J, C_in = x.shape
    C_out = W.shape[2]

    # ---- Batch-invariant preprocessing hoisted into plain XLA ----
    adj = jax.nn.softmax(adj_logits, axis=1)                            # (J, J)
    d = jnp.diagonal(adj).reshape(J, 1).astype(jnp.float32)             # diag(adj)
    adj_off = (adj * (1.0 - jnp.eye(J, dtype=adj.dtype))).astype(jnp.float32)

    # ---- Padding / tiling: J to sublane multiple, batch into ~128-row tiles ----
    J_pad = _round_up(J, 8)
    if batch_tile is None:
        batch_tile = max(1, min(B, max(1, 128 // J_pad)))
    bt = int(batch_tile)
    B_pad = _round_up(B, bt)
    n_tiles = B_pad // bt
    rows = bt * J_pad

    adj_off_p = jnp.zeros((J_pad, J_pad), jnp.float32).at[:J, :J].set(adj_off)
    d_p = jnp.zeros((J_pad, 1), jnp.float32).at[:J, :].set(d)

    # Block-diagonal adjacency: aggregates a whole batch tile in one MXU push
    # with trivially Mosaic-friendly layouts (no in-kernel B<->J relayout).
    a_big = jnp.kron(jnp.eye(bt, dtype=jnp.float32), adj_off_p)         # (rows, rows)
    d_tile = jnp.tile(d_p, (bt, 1))                                     # (rows, 1)

    x_p = jnp.zeros((B_pad, J_pad, C_in), x.dtype).at[:B, :J, :].set(x)
    x2d = x_p.reshape(B_pad * J_pad, C_in)

    w0 = W[0].astype(jnp.float32)
    w1 = W[1].astype(jnp.float32)
    bias2d = jnp.asarray(bias).reshape(1, C_out).astype(jnp.float32)

    if mxu_dtype is not None:
        x2d = x2d.astype(mxu_dtype)
        a_big = a_big.astype(mxu_dtype)
        w0 = w0.astype(mxu_dtype)
        w1 = w1.astype(mxu_dtype)
    # d_tile / bias stay f32 (elementwise VPU path, f32 on every generation).

    itemsize = jnp.dtype(x2d.dtype).itemsize
    out_itemsize = jnp.dtype(x.dtype).itemsize
    const_bytes = (a_big.size * itemsize + d_tile.size * 4
                   + (w0.size + w1.size) * itemsize + bias2d.size * 4)
    flops = n_tiles * (2 * rows * rows * C_in + 2 * 2 * rows * C_in * C_out)
    bytes_accessed = (x2d.size * itemsize + B_pad * J_pad * C_out * out_itemsize
                      + const_bytes)
    cost = pl.CostEstimate(flops=int(flops), transcendentals=0,
                           bytes_accessed=int(bytes_accessed))

    # Explicit VMEM budget: 2x (double buffering) everything + 2x headroom.
    vmem_need = 2 * (rows * C_in * itemsize + rows * C_out * out_itemsize + const_bytes)
    vmem_limit = int(max(8 * 1024 * 1024, 2 * vmem_need))

    out2d = pl.pallas_call(
        _sem_graph_conv_kernel,
        out_shape=jax.ShapeDtypeStruct((B_pad * J_pad, C_out), x.dtype),
        grid_spec=pltpu.PrefetchScalarGridSpec(
            num_scalar_prefetch=0,
            grid=(n_tiles,),
            in_specs=[
                pl.BlockSpec((rows, C_in), lambda i: (i, 0)),    # x (batch-tiled)
                pl.BlockSpec((rows, rows), lambda i: (0, 0)),    # kron(I_bt, adj_off)
                pl.BlockSpec((rows, 1), lambda i: (0, 0)),       # tiled diag(adj)
                pl.BlockSpec((C_in, C_out), lambda i: (0, 0)),   # W0
                pl.BlockSpec((C_in, C_out), lambda i: (0, 0)),   # W1
                pl.BlockSpec((1, C_out), lambda i: (0, 0)),      # bias
            ],
            out_specs=pl.BlockSpec((rows, C_out), lambda i: (i, 0)),
        ),
        compiler_params=pltpu.CompilerParams(
            dimension_semantics=("parallel",),
            vmem_limit_bytes=vmem_limit),
        cost_estimate=cost,
    )(x2d, a_big, d_tile, w0, w1, bias2d)

    return out2d.reshape(B_pad, J_pad, C_out)[:B, :J, :]


def build_params(key, in_features, out_features, adj):
    """Deterministic parameter init mirroring SemGraphConv.__init__."""
    kW, kb = jax.random.split(key)
    # Xavier-uniform with gain=1.414 over (in_features, out_features).
    gain = 1.414
    limit = gain * math.sqrt(6.0 / (in_features + out_features))
    W = jax.random.uniform(kW, (2, in_features, out_features),
                           minval=-limit, maxval=limit, dtype=jnp.float32)
    # e is initialized to 1 at every nonzero adjacency entry, so the masked
    # logits are simply 1 where adj > 0 and -9e15 elsewhere.
    adj_logits = jnp.where(adj > 0, 1.0, -9e15).astype(jnp.float32)
    # Bias ~ U(-stdv, stdv), stdv = 1/sqrt(out_features).
    stdv = 1.0 / math.sqrt(out_features)
    bias = jax.random.uniform(kb, (1, out_features),
                              minval=-stdv, maxval=stdv, dtype=jnp.float32)
    return W, adj_logits, bias


def reference_forward(x, W, adj_logits, bias):
    """Pure-JAX reference matching the PyTorch SemGraphConv forward."""
    h0 = jnp.matmul(x, W[0])
    h1 = jnp.matmul(x, W[1])
    adj = jax.nn.softmax(adj_logits, axis=1)
    J = adj.shape[0]
    M = jnp.eye(J, dtype=adj.dtype)
    out = jnp.matmul(adj * M, h0) + jnp.matmul(adj * (1.0 - M), h1)
    return out + bias.reshape(1, 1, -1)


if __name__ == "__main__":
    key = jax.random.PRNGKey(0)

    def chain_adj(J):
        # Chain-graph adjacency with self loops over J joints.
        adj = jnp.eye(J, dtype=jnp.float32)
        idx = jnp.arange(J - 1)
        adj = adj.at[idx, idx + 1].set(1.0)
        adj = adj.at[idx + 1, idx].set(1.0)
        return adj

    ok = True
    # Second config exercises the J-padding path (J=17 like real GAST-Net).
    for (B, J, C_in, C_out) in [(2, 16, 16, 32), (3, 17, 24, 48)]:
        kx, kp, key = jax.random.split(key, 3)
        adj = chain_adj(J)
        x = jax.random.normal(kx, (B, J, C_in), dtype=jnp.float32)
        W, adj_logits, bias = build_params(kp, C_in, C_out, adj)

        out = jax.block_until_ready(sem_graph_conv(x, W, adj_logits, bias))
        ref = reference_forward(x, W, adj_logits, bias)
        ok = ok and (out.shape == (B, J, C_out))
        ok = ok and bool(jnp.allclose(out, ref, atol=1e-4, rtol=1e-4))

    assert ok
    print("KERNEL_OK")
</pallas_src>

<mosaic_0001>
module attributes {stable_mosaic.version = 11 : i64} {
  func.func @_sem_graph_conv_kernel(%arg0: i32, %arg1: memref<32x16xf32, #tpu.memory_space<vmem>>, %arg2: memref<32x32xf32, #tpu.memory_space<vmem>>, %arg3: memref<32x1xf32, #tpu.memory_space<vmem>>, %arg4: memref<16x32xf32, #tpu.memory_space<vmem>>, %arg5: memref<16x32xf32, #tpu.memory_space<vmem>>, %arg6: memref<1x32xf32, #tpu.memory_space<vmem>>, %arg7: memref<32x32xf32, #tpu.memory_space<vmem>>) attributes {dimension_semantics = [#tpu.dimension_semantics<parallel>], iteration_bounds = array<i64: 1>, scalar_prefetch = 0 : i64, scratch_operands = 0 : i64, tpu.core_type = #tpu.core_type<tc>, window_params = [{transform_indices = @transform_0, window_bounds = array<i64: 32, 16>}, {pipeline_mode = #tpu.pipeline_mode<synchronous>, transform_indices = @transform_1, window_bounds = array<i64: 32, 32>}, {pipeline_mode = #tpu.pipeline_mode<synchronous>, transform_indices = @transform_2, window_bounds = array<i64: 32, 1>}, {pipeline_mode = #tpu.pipeline_mode<synchronous>, transform_indices = @transform_3, window_bounds = array<i64: 16, 32>}, {pipeline_mode = #tpu.pipeline_mode<synchronous>, transform_indices = @transform_4, window_bounds = array<i64: 16, 32>}, {pipeline_mode = #tpu.pipeline_mode<synchronous>, transform_indices = @transform_5, window_bounds = array<i64: 1, 32>}, {transform_indices = @transform_6, window_bounds = array<i64: 32, 32>}]} {
    %c0 = arith.constant 0 : index
    %c0_0 = arith.constant 0 : index
    %0 = vector.load %arg1[%c0, %c0_0] : memref<32x16xf32, #tpu.memory_space<vmem>>, vector<32x16xf32>
    %c0_1 = arith.constant 0 : index
    %c0_2 = arith.constant 0 : index
    %1 = vector.load %arg2[%c0_1, %c0_2] : memref<32x32xf32, #tpu.memory_space<vmem>>, vector<32x32xf32>
    %cst = arith.constant dense<0.000000e+00> : vector<32x16xf32>
    %2 = tpu.matmul %1, %0, %cst {dimension_numbers = #tpu.dot_dimension_numbers<[1], [0], [0], [1], [0, 0, 1, 1], [], []>} : vector<32x32xf32>, vector<32x16xf32>, vector<32x16xf32> -> vector<32x16xf32>
    %c0_3 = arith.constant 0 : index
    %c0_4 = arith.constant 0 : index
    %3 = vector.load %arg3[%c0_3, %c0_4] : memref<32x1xf32, #tpu.memory_space<vmem>>, vector<32x1xf32>
    %4 = vector.broadcast %3 : vector<32x1xf32> to vector<32x16xf32>
    %5 = arith.mulf %4, %0 : vector<32x16xf32>
    %c0_5 = arith.constant 0 : index
    %c0_6 = arith.constant 0 : index
    %6 = vector.load %arg4[%c0_5, %c0_6] : memref<16x32xf32, #tpu.memory_space<vmem>>, vector<16x32xf32>
    %cst_7 = arith.constant dense<0.000000e+00> : vector<32x32xf32>
    %7 = tpu.matmul %5, %6, %cst_7 {dimension_numbers = #tpu.dot_dimension_numbers<[1], [0], [0], [1], [0, 0, 1, 1], [], []>} : vector<32x16xf32>, vector<16x32xf32>, vector<32x32xf32> -> vector<32x32xf32>
    %c0_8 = arith.constant 0 : index
    %c0_9 = arith.constant 0 : index
    %8 = vector.load %arg5[%c0_8, %c0_9] : memref<16x32xf32, #tpu.memory_space<vmem>>, vector<16x32xf32>
    %cst_10 = arith.constant dense<0.000000e+00> : vector<32x32xf32>
    %9 = tpu.matmul %2, %8, %cst_10 {dimension_numbers = #tpu.dot_dimension_numbers<[1], [0], [0], [1], [0, 0, 1, 1], [], []>} : vector<32x16xf32>, vector<16x32xf32>, vector<32x32xf32> -> vector<32x32xf32>
    %10 = arith.addf %7, %9 : vector<32x32xf32>
    %c0_11 = arith.constant 0 : index
    %c0_12 = arith.constant 0 : index
    %11 = vector.load %arg6[%c0_11, %c0_12] : memref<1x32xf32, #tpu.memory_space<vmem>>, vector<1x32xf32>
    %12 = vector.broadcast %11 : vector<1x32xf32> to vector<32x32xf32>
    %13 = arith.addf %10, %12 : vector<32x32xf32>
    %c0_13 = arith.constant 0 : index
    %c0_14 = arith.constant 0 : index
    %14 = vector.load %arg7[%c0_13, %c0_14] : memref<32x32xf32, #tpu.memory_space<vmem>>, vector<32x32xf32>
    tpu.vector_store %arg7[%c0_13, %c0_14], %13 {strides = array<i32>} : memref<32x32xf32, #tpu.memory_space<vmem>>, vector<32x32xf32>,
    return
  }
  func.func @transform_0(%arg0: i32) -> (i32, i32) {
    %c0_i32 = arith.constant 0 : i32
    %c0_i32_0 = arith.constant 0 : i32
    return %arg0, %c0_i32 : i32, i32
  }
  func.func @transform_1(%arg0: i32) -> (i32, i32) {
    %c0_i32 = arith.constant 0 : i32
    %c0_i32_0 = arith.constant 0 : i32
    %c0_i32_1 = arith.constant 0 : i32
    return %c0_i32, %c0_i32_0 : i32, i32
  }
  func.func @transform_2(%arg0: i32) -> (i32, i32) {
    %c0_i32 = arith.constant 0 : i32
    %c0_i32_0 = arith.constant 0 : i32
    %c0_i32_1 = arith.constant 0 : i32
    return %c0_i32, %c0_i32_0 : i32, i32
  }
  func.func @transform_3(%arg0: i32) -> (i32, i32) {
    %c0_i32 = arith.constant 0 : i32
    %c0_i32_0 = arith.constant 0 : i32
    %c0_i32_1 = arith.constant 0 : i32
    return %c0_i32, %c0_i32_0 : i32, i32
  }
  func.func @transform_4(%arg0: i32) -> (i32, i32) {
    %c0_i32 = arith.constant 0 : i32
    %c0_i32_0 = arith.constant 0 : i32
    %c0_i32_1 = arith.constant 0 : i32
    return %c0_i32, %c0_i32_0 : i32, i32
  }
  func.func @transform_5(%arg0: i32) -> (i32, i32) {
    %c0_i32 = arith.constant 0 : i32
    %c0_i32_0 = arith.constant 0 : i32
    %c0_i32_1 = arith.constant 0 : i32
    return %c0_i32, %c0_i32_0 : i32, i32
  }
  func.func @transform_6(%arg0: i32) -> (i32, i32) {
    %c0_i32 = arith.constant 0 : i32
    %c0_i32_0 = arith.constant 0 : i32
    return %arg0, %c0_i32 : i32, i32
  }
}

</mosaic_0001>

<llo_original>
// kernel: tpu_custom_call.1
$region0: #{tpu_custom_call.1}
  #allocation0 [shape = 'u32[]', space=smem, size = 0x4, offset = 0x4, fixed_abs, tag = 'smem constant byte address 0x4 - core index']
  #allocation1 [shape = 'u32[72,128]{1,0:T(1,128)}', space=vmem, size = 0x9000, scoped, tag = 'internal scratch']
  %s0 = inlined_call_operand.vmem [shape: f32[32,16], index: 0, kind: input, shape index: {}]
  %s1 = inlined_call_operand.vmem [shape: f32[32,32], index: 1, kind: input, shape index: {}]
  %s2 = inlined_call_operand.vmem [shape: f32[32,1], index: 2, kind: input, shape index: {}]
  %s3 = inlined_call_operand.vmem [shape: f32[16,32], index: 3, kind: input, shape index: {}]
  %s4 = inlined_call_operand.vmem [shape: f32[16,32], index: 4, kind: input, shape index: {}]
  %s5 = inlined_call_operand.vmem [shape: f32[1,32], index: 5, kind: input, shape index: {}]
  %s6 = inlined_call_operand.hbm [shape: f32[32,32], index: 6, kind: output, shape index: {}]
  %s7 = sld [smem:[#allocation0]]
  $region34: #{tpu_custom_call.1} parent=0
    _
  %s9 = ssub.s32 1, %s7
  %s10 = scalar_select 0, %s9, %s7
  $region1: #{tpu_custom_call.1} parent=0
    #allocation2 [shape = 'u8[16384]{0}', space=vmem, size = 0x4000, scoped, tag = 'output window, operand 0, single buffered']
    #allocation3 [shape = 's32[1]{0}', space=sflag, size = 0x4, scoped, tag = 'scoped memory for tpu_custom_call.1']
    %11 = vsyncpa [#allocation3], 0
    // Predicated region
    $region2: #{tpu_custom_call.1} parent=1 // pred_check
      _
    $region3: #{tpu_custom_call.1} parent=1 // pred_check_branch
      %13 = sbr.rel (0) target = $region5
    $region4: #{tpu_custom_call.1} parent=1 // pred_region
      _
    $region5: #{tpu_custom_call.1} parent=1 // pred_fallthru
      _
    // Predicated region
    $region6: #{tpu_custom_call.1} parent=1 // pred_check
      _
    $region7: #{tpu_custom_call.1} parent=1 // pred_check_branch
      %15 = sbr.rel (0) target = $region9
    $region8: #{tpu_custom_call.1} parent=1 // pred_region
      _
    $region9: #{tpu_custom_call.1} parent=1 // pred_fallthru
      _
    // Predicated region
    $region10: #{tpu_custom_call.1} parent=1 // pred_check
      _
    $region11: #{tpu_custom_call.1} parent=1 // pred_check_branch
      %17 = sbr.rel (0) target = $region13
    $region12: #{tpu_custom_call.1} parent=1 // pred_region
      _
    $region13: #{tpu_custom_call.1} parent=1 // pred_fallthru
      _
    // Predicated region
    $region14: #{tpu_custom_call.1} parent=1 // pred_check
      _
    $region15: #{tpu_custom_call.1} parent=1 // pred_check_branch
      %19 = sbr.rel (0) target = $region17
    $region16: #{tpu_custom_call.1} parent=1 // pred_region
      _
    $region17: #{tpu_custom_call.1} parent=1 // pred_fallthru
      _
    // Predicated region
    $region18: #{tpu_custom_call.1} parent=1 // pred_check
      _
    $region19: #{tpu_custom_call.1} parent=1 // pred_check_branch
      %21 = sbr.rel (0) target = $region21
    $region20: #{tpu_custom_call.1} parent=1 // pred_region
      _
    $region21: #{tpu_custom_call.1} parent=1 // pred_fallthru
      _
    // Predicated region
    $region22: #{tpu_custom_call.1} parent=1 // pred_check
      _
    $region23: #{tpu_custom_call.1} parent=1 // pred_check_branch
      %23 = sbr.rel (0) target = $region25
    $region24: #{tpu_custom_call.1} parent=1 // pred_region
      _
    $region25: #{tpu_custom_call.1} parent=1 // pred_fallthru
      _
    %v24 = vld [vmem:[%s0] sm:$0xff]
    %v25 = vld [vmem:[%s0 + $0x8] sm:$0xff]
    %v26 = vld [vmem:[%s0 + $0x10] sm:$0xff]
    %v27 = vld [vmem:[%s0 + $0x18] sm:$0xff]
    %v28 = vld [vmem:[%s1] sm:$0xff]
    %v29 = vld [vmem:[%s1 + $0x8] sm:$0xff]
    %v30 = vld [vmem:[%s1 + $0x10] sm:$0xff]
    %v31 = vld [vmem:[%s1 + $0x18] sm:$0xff]
    %vm32 = vcmask 261120
    %v34 = vsel %vm32, %v28, 0
    %v37 = vsel %vm32, %v29, 0
    %v40 = vsel %vm32, %v30, 0
    %v43 = vsel %vm32, %v31, 0
    %45 = vmatpush.msra.mxu0 0.0
    %46 = vmatpush.msra.mxu0 0.0
    %47 = vmatpush.msra.mxu0 0.0
    %48 = vmatpush.msra.mxu0 0.0
    %49 = vmatpush.msra.mxu0 0.0
    %50 = vmatpush.msra.mxu0 0.0
    %51 = vmatpush.msra.mxu0 0.0
    %52 = vmatpush.msra.mxu0 0.0
    %53 = vmatpush.msra.mxu0 0.0
    %54 = vmatpush.msra.mxu0 0.0
    %55 = vmatpush.msra.mxu0 0.0
    %56 = vmatpush.msra.mxu0 0.0
    %57 = vmatpush.msra.mxu0 %v27
    %58 = vmatpush.msra.mxu0 %v26
    %59 = vmatpush.msra.mxu0 %v25
    %60 = vmatpush.msra.mxu0 %v24
    %61 = vmatmul.f32.gmra.mxu0 %v34
    %v62 = vpop.f32.mrf.mxu0
    %v63 = vadd.f32 0.0, %v62
    %64 = vmatmul.f32.gmra.mxu0 %v37
    %v65 = vpop.f32.mrf.mxu0
    %v66 = vadd.f32 0.0, %v65
    %67 = vmatmul.f32.gmra.mxu0 %v40
    %v68 = vpop.f32.mrf.mxu0
    %v69 = vadd.f32 0.0, %v68
    %70 = vmatmul.f32.gmra.mxu0 %v43
    %v71 = vpop.f32.mrf.mxu0
    %v72 = vadd.f32 0.0, %v71
    %73 = vdwg.mxu0
    %v74 = vld [vmem:[%s2] sm:$0xff]
    %v75 = vld [vmem:[%s2 + $0x8] sm:$0xff]
    %v76 = vld [vmem:[%s2 + $0x10] sm:$0xff]
    %v77 = vld [vmem:[%s2 + $0x18] sm:$0xff]
    %79 = vset.pattern.permute.xlu0 0
    %80 = vperm.xlu0 %79, %v74
    %v81 = vpop.permute.xlu0 %80
    %84 = vset.pattern.permute.xlu0 0
    %85 = vperm.xlu0 %84, %v75
    %v86 = vpop.permute.xlu0 %85
    %89 = vset.pattern.permute.xlu0 0
    %90 = vperm.xlu0 %89, %v76
    %v91 = vpop.permute.xlu0 %90
    %94 = vset.pattern.permute.xlu0 0
    %95 = vperm.xlu0 %94, %v77
    %v96 = vpop.permute.xlu0 %95
    %v98 = vmul.f32 %v81, %v24
    %v99 = vmul.f32 %v86, %v25
    %v100 = vmul.f32 %v91, %v26
    %v101 = vmul.f32 %v96, %v27
    %v102 = vld [vmem:[%s3] sm:$0xff]
    %v103 = vld [vmem:[%s3 + $0x8] sm:$0xff]
    %v104 = vld [vmem:[%s4] sm:$0xff]
    %v105 = vld [vmem:[%s4 + $0x8] sm:$0xff]
    %vm106 = vcmask 130048
    %v108 = vsel %vm106, %v63, 0
    %v111 = vsel %vm106, %v66, 0
    %v114 = vsel %vm106, %v69, 0
    %v117 = vsel %vm106, %v72, 0
    %119 = vmatpush.msra.mxu0 0.0
    %120 = vmatpush.msra.mxu0 0.0
    %121 = vmatpush.msra.mxu0 0.0
    %122 = vmatpush.msra.mxu0 0.0
    %123 = vmatpush.msra.mxu0 0.0
    %124 = vmatpush.msra.mxu0 0.0
    %125 = vmatpush.msra.mxu0 0.0
    %126 = vmatpush.msra.mxu0 0.0
    %127 = vmatpush.msra.mxu0 0.0
    %128 = vmatpush.msra.mxu0 0.0
    %129 = vmatpush.msra.mxu0 0.0
    %130 = vmatpush.msra.mxu0 0.0
    %131 = vmatpush.msra.mxu0 0.0
    %132 = vmatpush.msra.mxu0 0.0
    %133 = vmatpush.msra.mxu0 %v105
    %134 = vmatpush.msra.mxu0 %v104
    %135 = vmatmul.f32.gmra.mxu0 %v108
    %v136 = vpop.f32.mrf.mxu0
    %v137 = vadd.f32 0.0, %v136
    %138 = vmatmul.f32.gmra.mxu0 %v111
    %v139 = vpop.f32.mrf.mxu0
    %v140 = vadd.f32 0.0, %v139
    %141 = vmatmul.f32.gmra.mxu0 %v114
    %v142 = vpop.f32.mrf.mxu0
    %v143 = vadd.f32 0.0, %v142
    %144 = vmatmul.f32.gmra.mxu0 %v117
    %v145 = vpop.f32.mrf.mxu0
    %v146 = vadd.f32 0.0, %v145
    %147 = vdwg.mxu0
    %v149 = vsel %vm106, %v98, 0
    %v152 = vsel %vm106, %v99, 0
    %v155 = vsel %vm106, %v100, 0
    %v158 = vsel %vm106, %v101, 0
    %160 = vmatpush.msra.mxu0 0.0
    %161 = vmatpush.msra.mxu0 0.0
    %162 = vmatpush.msra.mxu0 0.0
    %163 = vmatpush.msra.mxu0 0.0
    %164 = vmatpush.msra.mxu0 0.0
    %165 = vmatpush.msra.mxu0 0.0
    %166 = vmatpush.msra.mxu0 0.0
    %167 = vmatpush.msra.mxu0 0.0
    %168 = vmatpush.msra.mxu0 0.0
    %169 = vmatpush.msra.mxu0 0.0
    %170 = vmatpush.msra.mxu0 0.0
    %171 = vmatpush.msra.mxu0 0.0
    %172 = vmatpush.msra.mxu0 0.0
    %173 = vmatpush.msra.mxu0 0.0
    %174 = vmatpush.msra.mxu0 %v103
    %175 = vmatpush.msra.mxu0 %v102
    %176 = vmatmul.f32.gmra.mxu0 %v149
    %v177 = vpop.f32.mrf.mxu0
    %v178 = vadd.f32 %v137, %v177
    %179 = vmatmul.f32.gmra.mxu0 %v152
    %v180 = vpop.f32.mrf.mxu0
    %v181 = vadd.f32 %v140, %v180
    %182 = vmatmul.f32.gmra.mxu0 %v155
    %v183 = vpop.f32.mrf.mxu0
    %v184 = vadd.f32 %v143, %v183
    %185 = vmatmul.f32.gmra.mxu0 %v158
    %v186 = vpop.f32.mrf.mxu0
    %v187 = vadd.f32 %v146, %v186
    %188 = vdwg.mxu0
    %v189 = vld [vmem:[%s5] sm:$0x1]
    %v191 = vperm.slane %v189, 0
    %v193 = vadd.f32 %v178, %v191
    %v194 = vadd.f32 %v181, %v191
    %v195 = vadd.f32 %v184, %v191
    %v196 = vadd.f32 %v187, %v191
    %197 = vst.msk [vmem:[#allocation2] sm:$0xff] %vm32, %v193
    %198 = vst.msk [vmem:[#allocation2 + $0x8] sm:$0xff] %vm32, %v194
    %199 = vst.msk [vmem:[#allocation2 + $0x10] sm:$0xff] %vm32, %v195
    %200 = vst.msk [vmem:[#allocation2 + $0x18] sm:$0xff] %vm32, %v196
    // Predicated region
    $region26: #{tpu_custom_call.1} parent=1 // pred_check
      _
    $region27: #{tpu_custom_call.1} parent=1 // pred_check_branch
      %202 = sbr.rel (0) target = $region29
    $region28: #{tpu_custom_call.1} parent=1 // pred_region
      %204 = vsyncadd [#allocation3], 0
      %s205 = sshll.u32 [#allocation2], 4
      %s206 = int_to_ptr.vmem [resolvable:$true] %s205
      %s207 = sshll.u32 %s6, 4
      %s208 = int_to_ptr.hbm [resolvable:$true] %s207
      %213 = dma.vmem_to_hbm [thread:$0]  %s206, 512, %s208, [#allocation3], 128, 128, 8
    $region29: #{tpu_custom_call.1} parent=1 // pred_fallthru
      _
    // Predicated region
    $region30: #{tpu_custom_call.1} parent=1 // pred_check
      _
    $region31: #{tpu_custom_call.1} parent=1 // pred_check_branch
      %215 = sbr.rel (0) target = $region33
    $region32: #{tpu_custom_call.1} parent=1 // pred_region
      %217 = dma.done [#allocation3], 512
    $region33: #{tpu_custom_call.1} parent=1 // pred_fallthru
      _
    %218 = vsyncpa [#allocation3], 1

</llo_original>
